<compile_context>
chip_gen: v5e
topology: v5e:2x2
jax: 0.10.0
libtpu: 0.0.40
codegen_flags: <defaults>
</compile_context>

<pallas_src>
import jax
import jax.numpy as jnp
from jax.experimental import pallas as pl
from jax.experimental.pallas import tpu as pltpu


# ----------------------------- kernels ------------------------------------ #

def _bcast_flat_kernel(table_ref, out_ref):
    # table_ref: (1, tSE)  lane-dense slice of the flat table (first S rows)
    # out_ref:   (B, tSE)  same slice replicated across the batch (sublanes)
    out_ref[...] = jnp.broadcast_to(table_ref[...], out_ref.shape)


def _bcast_rows_kernel(table_ref, out_ref):
    # table_ref: (tS, E)     rows [s*tS, s*tS+tS) of the table
    # out_ref:   (B, tS, E)  the same rows replicated across the batch
    out_ref[...] = jnp.broadcast_to(table_ref[...][None, :, :], out_ref.shape)


# --------------------------- sizing helpers -------------------------------- #

def _cdiv(a: int, b: int) -> int:
    return -(-a // b)


def _round_up(x: int, m: int) -> int:
    return _cdiv(x, m) * m


def _vmem_budget() -> tuple[int, int]:
    """(tile_budget_bytes, vmem_limit_bytes) per TPU generation."""
    try:
        info = pltpu.get_tpu_info()
        vmem_phys = getattr(info, "vmem_capacity_bytes", None) or (64 << 20)
    except Exception:
        vmem_phys = 64 << 20  # conservative fallback (safe on every generation)
    if vmem_phys >= (96 << 20):        # v5e / v6e: 128 MiB physical VMEM
        return 32 << 20, 64 << 20
    else:                              # v7x: 64 MiB physical VMEM
        return 12 << 20, 32 << 20


def _pick_tile(total: int, align: int, bytes_per_unit: int, budget_bytes: int,
               min_steps: int = 8, min_units: int = 4) -> int:
    """Tile extent (multiple of `align`) along the single tiled grid axis.

    `bytes_per_unit` is the true double-buffered, padding-inclusive VMEM cost of
    one `align`-sized unit of tile (input block + output block).  The tile is
    (a) big enough for efficient DMA bursts, (b) small enough that the grid has
    >= min_steps steps when `total` allows (pipelining + megacore split), and
    (c) within the VMEM budget.
    """
    n_units = _cdiv(total, align)
    cap_units = max(1, budget_bytes // max(bytes_per_unit, 1))

    tile_units = max(min(n_units, min_units), _cdiv(n_units, min_steps))
    tile_units = min(tile_units, cap_units, n_units)
    steps = _cdiv(n_units, tile_units)

    # v7x megacore: prefer an even step count >= 2 on the ("parallel",) axis.
    if steps == 1 and n_units >= 2:
        tile_units = _cdiv(n_units, 2)
    elif steps % 2 == 1:
        alt = _cdiv(n_units, steps + 1)
        if alt >= 1 and _cdiv(n_units, alt) % 2 == 0 and alt <= cap_units:
            tile_units = alt

    return tile_units * align


# ------------------------------ wrapper ------------------------------------ #

def positional_embedding(sequence: jax.Array, table: jax.Array) -> jax.Array:
    """sequence: (B, S) any dtype (only the shape is used); table: (V, E)."""
    B, S = sequence.shape
    V, E = table.shape
    if S > V:
        # torch nn.Embedding would raise an index error for positions >= V
        raise ValueError(f"sequence length {S} exceeds max_sequence_length {V}")

    itemsize = jnp.dtype(table.dtype).itemsize
    tile_budget, vmem_limit = _vmem_budget()
    cost = pl.CostEstimate(
        flops=0, transcendentals=0,
        bytes_accessed=(S * E + B * S * E) * itemsize,
    )
    cparams = pltpu.CompilerParams(
        dimension_semantics=("parallel",),
        vmem_limit_bytes=vmem_limit,
    )

    if E % 128 == 0:
        # Lane-dense flat path: table viewed as (1, V*E), output as (B, S*E).
        # With E a multiple of 128 the reshapes at the boundary are free views
        # (no relayout), and every store is an unmasked, 128-lane-dense vst.
        SE = S * E
        table_flat = table.reshape(1, V * E)
        # Padded VMEM cost per 128-lane unit: input block (1->8 sublanes) +
        # output block (B -> round_up(B, 8) sublanes), double-buffered.
        bytes_per_unit = 128 * itemsize * (8 + _round_up(B, 8)) * 2
        tSE = _pick_tile(SE, 128, bytes_per_unit, tile_budget)
        grid = (_cdiv(SE, tSE),)

        out_flat = pl.pallas_call(
            _bcast_flat_kernel,
            out_shape=jax.ShapeDtypeStruct((B, SE), table.dtype),
            grid_spec=pltpu.PrefetchScalarGridSpec(
                num_scalar_prefetch=0,
                grid=grid,
                # Only the first S*E elements of the flat table are ever fetched;
                # the partial last tile (if any) is masked by Pallas.
                in_specs=[pl.BlockSpec((1, tSE), lambda s: (0, s))],
                out_specs=pl.BlockSpec((B, tSE), lambda s: (0, s)),
            ),
            compiler_params=cparams,
            cost_estimate=cost,
        )(table_flat)
        return out_flat.reshape(B, S, E)

    # General path (E not a multiple of 128): write the (B, S, E) output directly
    # with (B, tS, E) blocks tiled over S — no reshape boundary, so XLA inserts no
    # relayout copy of the output.
    # Padded VMEM cost per 8-sublane unit of S: (1 input row-tile + B output
    # row-tiles) of round_up(E, 128) lanes, double-buffered.
    bytes_per_unit = 8 * _round_up(E, 128) * itemsize * (1 + B) * 2
    tS = _pick_tile(S, 8, bytes_per_unit, tile_budget)
    grid = (_cdiv(S, tS),)

    return pl.pallas_call(
        _bcast_rows_kernel,
        out_shape=jax.ShapeDtypeStruct((B, S, E), table.dtype),
        grid_spec=pltpu.PrefetchScalarGridSpec(
            num_scalar_prefetch=0,
            grid=grid,
            in_specs=[pl.BlockSpec((tS, E), lambda s: (s, 0))],
            out_specs=pl.BlockSpec((B, tS, E), lambda s: (0, s, 0)),
        ),
        compiler_params=cparams,
        cost_estimate=cost,
    )(table)


# ------------------------------- test -------------------------------------- #

if __name__ == "__main__":
    key = jax.random.PRNGKey(0)
    k1, k2, k3, k4 = jax.random.split(key, 4)

    # Case 1: small E (not a multiple of 128) -> direct (B, S, E) path.
    B, S = 2, 8
    embedding_size = 32
    max_sequence_length = 16
    sequence = jax.random.randint(k1, (B, S), 0, max_sequence_length, dtype=jnp.int32)
    table = jax.random.normal(
        k2, (max_sequence_length, embedding_size), dtype=jnp.float32
    )
    out = jax.block_until_ready(positional_embedding(sequence, table))
    ref = jnp.broadcast_to(table[:S][None, :, :], (B, S, embedding_size))
    assert out.shape == (B, S, embedding_size)
    assert out.dtype == jnp.float32
    assert jnp.array_equal(out, ref), "mismatch vs reference (rows path)"

    # Case 2: E multiple of 128 -> flat lane-dense path.
    B2, S2, E2, V2 = 2, 16, 128, 32
    sequence2 = jax.random.randint(k3, (B2, S2), 0, V2, dtype=jnp.int32)
    table2 = jax.random.normal(k4, (V2, E2), dtype=jnp.float32)
    out2 = jax.block_until_ready(positional_embedding(sequence2, table2))
    ref2 = jnp.broadcast_to(table2[:S2][None, :, :], (B2, S2, E2))
    assert out2.shape == (B2, S2, E2)
    assert jnp.array_equal(out2, ref2), "mismatch vs reference (flat path)"

    print("KERNEL_OK")
</pallas_src>

<mosaic_0001>
module attributes {stable_mosaic.version = 11 : i64} {
  func.func @_bcast_rows_kernel(%arg0: i32, %arg1: memref<8x32xf32, #tpu.memory_space<vmem>>, %arg2: memref<2x8x32xf32, #tpu.memory_space<vmem>>) attributes {dimension_semantics = [#tpu.dimension_semantics<parallel>], iteration_bounds = array<i64: 1>, scalar_prefetch = 0 : i64, scratch_operands = 0 : i64, tpu.core_type = #tpu.core_type<tc>, window_params = [{transform_indices = @transform_0, window_bounds = array<i64: 8, 32>}, {transform_indices = @transform_1, window_bounds = array<i64: 2, 8, 32>}]} {
    %c0 = arith.constant 0 : index
    %c0_0 = arith.constant 0 : index
    %0 = vector.load %arg1[%c0, %c0_0] : memref<8x32xf32, #tpu.memory_space<vmem>>, vector<8x32xf32>
    %1 = vector.shape_cast %0 : vector<8x32xf32> to vector<1x8x32xf32>
    %2 = vector.shape_cast %1 : vector<1x8x32xf32> to vector<1x8x32xf32>
    %3 = vector.broadcast %2 : vector<1x8x32xf32> to vector<2x8x32xf32>
    %c0_1 = arith.constant 0 : index
    %c0_2 = arith.constant 0 : index
    %c0_3 = arith.constant 0 : index
    %4 = vector.load %arg2[%c0_1, %c0_2, %c0_3] : memref<2x8x32xf32, #tpu.memory_space<vmem>>, vector<2x8x32xf32>
    tpu.vector_store %arg2[%c0_1, %c0_2, %c0_3], %3 {strides = array<i32>} : memref<2x8x32xf32, #tpu.memory_space<vmem>>, vector<2x8x32xf32>,
    return
  }
  func.func @transform_0(%arg0: i32) -> (i32, i32) {
    %c0_i32 = arith.constant 0 : i32
    %c0_i32_0 = arith.constant 0 : i32
    return %arg0, %c0_i32 : i32, i32
  }
  func.func @transform_1(%arg0: i32) -> (i32, i32, i32) {
    %c0_i32 = arith.constant 0 : i32
    %c0_i32_0 = arith.constant 0 : i32
    %c0_i32_1 = arith.constant 0 : i32
    return %c0_i32, %arg0, %c0_i32_0 : i32, i32, i32
  }
}

</mosaic_0001>

<llo_original>
// kernel: tpu_custom_call.1
$region0: #{tpu_custom_call.1}
  #allocation0 [shape = 'u32[]', space=smem, size = 0x4, offset = 0x4, fixed_abs, tag = 'smem constant byte address 0x4 - core index']
  #allocation1 [shape = 'u32[72,128]{1,0:T(1,128)}', space=vmem, size = 0x9000, scoped, tag = 'internal scratch']
  %s0 = inlined_call_operand.hbm [shape: f32[16,32], index: 0, kind: input, shape index: {}]
  %s1 = inlined_call_operand.hbm [shape: f32[2,8,32], index: 1, kind: output, shape index: {}]
  %s2 = sld [smem:[#allocation0]]
  $region18: #{tpu_custom_call.1} parent=0
    _
  %s4 = ssub.s32 1, %s2
  %s5 = scalar_select 0, %s4, %s2
  $region1: #{tpu_custom_call.1} parent=0
    #allocation2 [shape = 'u8[4096]{0}', space=vmem, size = 0x1000, scoped, tag = 'input window, operand 0, single buffered']
    #allocation3 [shape = 's32[1]{0}', space=sflag, size = 0x4, scoped, tag = 'scoped memory for tpu_custom_call.1']
    #allocation4 [shape = 's32[1]{0}', space=sflag, size = 0x4, scoped, tag = 'scoped memory for tpu_custom_call.1']
    #allocation5 [shape = 'u8[8192]{0}', space=vmem, size = 0x2000, scoped, tag = 'output window, operand 0, single buffered']
    %6 = vsyncpa [#allocation3], 0
    %7 = vsyncpa [#allocation4], 0
    // Predicated region
    $region2: #{tpu_custom_call.1} parent=1 // pred_check
      _
    $region3: #{tpu_custom_call.1} parent=1 // pred_check_branch
      %9 = sbr.rel (0) target = $region5
    $region4: #{tpu_custom_call.1} parent=1 // pred_region
      %11 = vsyncadd [#allocation3], 0
      %s13 = sshll.u32 %s0, 4
      %s14 = int_to_ptr.hbm [resolvable:$true] %s13
      %s15 = sshll.u32 [#allocation2], 4
      %s16 = int_to_ptr.vmem [resolvable:$true] %s15
      %18 = dma.hbm_to_vmem [thread:$0]  %s14, 128, %s16, [#allocation3]
    $region5: #{tpu_custom_call.1} parent=1 // pred_fallthru
      _
    // Predicated region
    $region6: #{tpu_custom_call.1} parent=1 // pred_check
      _
    $region7: #{tpu_custom_call.1} parent=1 // pred_check_branch
      %20 = sbr.rel (0) target = $region9
    $region8: #{tpu_custom_call.1} parent=1 // pred_region
      %22 = dma.done [#allocation3], 128
    $region9: #{tpu_custom_call.1} parent=1 // pred_fallthru
      _
    %v23 = vld [vmem:[#allocation2] sm:$0xff]
    %vm24 = vcmask 261120
    %25 = vst.msk [vmem:[#allocation5] sm:$0xff] %vm24, %v23
    %26 = vst.msk [vmem:[#allocation5 + $0x8] sm:$0xff] %vm24, %v23
    // Predicated region
    $region10: #{tpu_custom_call.1} parent=1 // pred_check
      _
    $region11: #{tpu_custom_call.1} parent=1 // pred_check_branch
      %28 = sbr.rel (0) target = $region13
    $region12: #{tpu_custom_call.1} parent=1 // pred_region
      %30 = vsyncadd [#allocation4], 0
      %s31 = sshll.u32 [#allocation5], 4
      %s32 = int_to_ptr.vmem [resolvable:$true] %s31
      %s33 = sshll.u32 %s1, 4
      %s34 = int_to_ptr.hbm [resolvable:$true] %s33
      %39 = dma.vmem_to_hbm [thread:$0]  %s32, 256, %s34, [#allocation4], 128, 128, 8
    $region13: #{tpu_custom_call.1} parent=1 // pred_fallthru
      _
    // Predicated region
    $region14: #{tpu_custom_call.1} parent=1 // pred_check
      _
    $region15: #{tpu_custom_call.1} parent=1 // pred_check_branch
      %41 = sbr.rel (0) target = $region17
    $region16: #{tpu_custom_call.1} parent=1 // pred_region
      %43 = dma.done [#allocation4], 256
    $region17: #{tpu_custom_call.1} parent=1 // pred_fallthru
      _
    %44 = vsyncpa [#allocation3], 1
    %45 = vsyncpa [#allocation4], 1

</llo_original>
